<compile_context>
chip_gen: v7x
topology: tpu7x:2x2x1
jax: 0.10.0
libtpu: 0.0.40
codegen_flags: <defaults>
</compile_context>

<pallas_src>
import jax
import jax.numpy as jnp
from jax.experimental import pallas as pl
from jax.experimental.pallas import tpu as pltpu


def _round_up(x, m):
    return (x + m - 1) // m * m


def _proj_pos_kernel(x_ref, w_ref, pb_ref, o_ref):
    """x_ref: (1, TS, F) input dtype; w_ref: (F, Hp) compute dtype;
    pb_ref: (TS, Hp) compute dtype; o_ref: (1, TS, Hp) out dtype."""
    # In-kernel cast of the x tile to the MXU compute dtype (VPU work hidden
    # under the DMA; avoids a separate XLA cast pass over x in HBM).
    x = x_ref[0].astype(w_ref.dtype)
    proj = jnp.dot(x, w_ref[...], preferred_element_type=jnp.float32)          # MXU, f32 acc
    o_ref[0] = (proj + pb_ref[...].astype(jnp.float32)).astype(o_ref.dtype)    # f32 epilogue


def position_encoding_forward(x, w, b, cls_token, pos_emb, *,
                              compute_dtype=jnp.bfloat16, tile_s=512):
    """Fused proj + CLS prepend + position-embedding add.

    x:         (B, S, F)   input embeddings (any float dtype; also the output dtype)
    w:         (F, H)      nn.Linear weight, pre-transposed
    b:         (H,)        nn.Linear bias
    cls_token: (H,)        learned CLS token
    pos_emb:   (S+1, H)    position embeddings (row 0 pairs with the CLS token)

    Returns (B, S+1, H) in x.dtype.

    compute_dtype: dtype fed to the MXU / stored for W and the fused bias+pos
    table. Default bf16 (f32 accumulation) for bandwidth; pass jnp.float32 for
    exact PyTorch nn.Linear numerics.
    """
    B, S, F = x.shape
    H = w.shape[1]
    assert pos_emb.shape == (S + 1, H)
    assert tile_s > 0

    out_dtype = x.dtype
    S1 = S + 1                                   # CLS row folded into the kernel output
    Hp = _round_up(H, 128)                       # lane-dense output tiles (unmasked vst)
    # TS multiple of 16 so bf16 output / pb blocks are sublane-packing clean.
    TS = _round_up(max(16, min(tile_s, _round_up(S1, 16))), 16)
    S1p = _round_up(S1, TS)
    n_s = S1p // TS

    # ---- constant folding in the wrapper (tiny, done once) -------------------
    # Row 0 carries the CLS token (the matching x row is zero), rows 1..S carry
    # the linear bias, so the kernel epilogue is a single add and there is no
    # concatenate over the (B, S+1, H) result.
    pos_bias = jnp.concatenate(
        [(cls_token + pos_emb[0]).reshape(1, H), pos_emb[1:S1] + b[None, :]],
        axis=0)                                                       # (S1, H)

    # ---- pad to tile boundaries (cheap: x is (B,S,F) with F << H typically) --
    x_k = jnp.pad(x, ((0, 0), (1, S1p - S1), (0, 0)))                 # zero CLS row + seq tail
    pb = pos_bias
    if S1p != S1 or Hp != H:
        pb = jnp.pad(pb, ((0, S1p - S1), (0, Hp - H)))
    w_k = w if Hp == H else jnp.pad(w, ((0, 0), (0, Hp - H)))

    # Only the small reused streams are pre-cast; x is cast inside the kernel.
    w_k = w_k.astype(compute_dtype)
    pb = pb.astype(compute_dtype)

    # ---- generation-aware VMEM budget ----------------------------------------
    itm_c = jnp.dtype(compute_dtype).itemsize
    itm_x = jnp.dtype(x.dtype).itemsize
    itm_o = jnp.dtype(out_dtype).itemsize
    buf_bytes = (2 * TS * F * itm_x        # x tile (double-buffered)
                 + 2 * F * Hp * itm_c      # resident weight (default double-buffered)
                 + 2 * TS * Hp * itm_c     # bias+pos tile
                 + 2 * TS * Hp * itm_o)    # output tile
    try:
        vmem_cap = int(pltpu.get_tpu_info().vmem_capacity_bytes)
    except Exception:
        vmem_cap = 128 * 2 ** 20
    # 3/4 of physical VMEM: ~48 MiB on v7x, ~96 MiB on v5e/v6e.
    vmem_limit = int(min(max(2 * buf_bytes, 16 * 2 ** 20), (3 * vmem_cap) // 4))
    # TODO(synk): for very large F*Hp on v7x (64 MiB VMEM), single-buffer the
    # grid-invariant weight (pipeline_mode=pl.Buffered(1)) or add an H-tiling
    # grid axis; realistic MOSI shapes keep W well under 1 MiB so it is simply
    # kept resident (and fetched once) here.
    # TODO(synk): for tiny H (<< 128) the Hp padding writes ~4x the needed output
    # bytes; a plain-XLA fallback would be preferable in production for that case.

    y = pl.pallas_call(
        _proj_pos_kernel,
        out_shape=jax.ShapeDtypeStruct((B, S1p, Hp), out_dtype),
        grid_spec=pltpu.PrefetchScalarGridSpec(
            num_scalar_prefetch=0,
            grid=(n_s, B),                                         # batch innermost: pb tile stays resident
            in_specs=[
                pl.BlockSpec((1, TS, F), lambda s, bi: (bi, s, 0)),  # x tile (input dtype)
                pl.BlockSpec((F, Hp), lambda s, bi: (0, 0)),         # weight (grid-invariant, resident)
                pl.BlockSpec((TS, Hp), lambda s, bi: (s, 0)),        # fused bias+pos tile
            ],
            out_specs=pl.BlockSpec((1, TS, Hp), lambda s, bi: (bi, s, 0)),
        ),
        compiler_params=pltpu.CompilerParams(
            dimension_semantics=("parallel", "parallel"),
            vmem_limit_bytes=vmem_limit),
    )(x_k, w_k, pb)

    if S1p != S1 or Hp != H:
        y = y[:, :S1, :H]
    # TODO(synk): training-mode dropout (pltpu.prng_seed + stateful_bernoulli
    # mask/scale) not implemented; eval-mode dropout is the identity.
    return y


def _reference(x, w, b, cls_token, pos_emb):
    B = x.shape[0]
    proj = jnp.einsum("bsf,fh->bsh", x, w) + b
    cls = jnp.broadcast_to(cls_token.reshape(1, 1, -1), (B, 1, w.shape[1]))
    return jnp.concatenate([cls, proj], axis=1) + pos_emb[None]


if __name__ == "__main__":
    # Small, module-consistent shapes: batch=2, num_patches (seq)=8,
    # fea_size=16, tf_hidden_dim=32.
    B, S, F, H = 2, 8, 16, 32

    key = jax.random.PRNGKey(0)
    k_x, k_w, k_b, k_p = jax.random.split(key, 4)

    x = jax.random.normal(k_x, (B, S, F), dtype=jnp.float32)
    w = jax.random.normal(k_w, (F, H), dtype=jnp.float32) * 0.05     # Linear weight (F, H)
    b = jax.random.normal(k_b, (H,), dtype=jnp.float32) * 0.01
    cls_token = jnp.ones((H,), dtype=jnp.float32)
    # Module zero-inits pos_emb; use small randoms so the add path is exercised.
    pos_emb = jax.random.normal(k_p, (S + 1, H), dtype=jnp.float32) * 0.02

    ref = _reference(x, w, b, cls_token, pos_emb)

    # 1) f32 compute path (exact nn.Linear numerics) — tight check.
    out_f32 = jax.block_until_ready(
        position_encoding_forward(x, w, b, cls_token, pos_emb,
                                  compute_dtype=jnp.float32))
    assert out_f32.shape == (B, S + 1, H)
    assert out_f32.dtype == x.dtype
    assert jnp.allclose(out_f32, ref, atol=1e-4, rtol=1e-4), "f32 mismatch"

    # 2) default bf16 MXU / bf16 pb streams (f32 accumulate + f32 epilogue) — loose check.
    out_bf16 = jax.block_until_ready(
        position_encoding_forward(x, w, b, cls_token, pos_emb))
    assert out_bf16.shape == (B, S + 1, H)
    assert jnp.allclose(out_bf16, ref, atol=2e-2, rtol=2e-2), "bf16 mismatch"

    # 3) lane-dense H (=128), multi-tile sequence: grid=(3, 2), no pad/slice on output.
    S2, H2 = 47, 128
    k2 = jax.random.split(jax.random.PRNGKey(0), 5)
    x2 = jax.random.normal(k2[0], (B, S2, F), dtype=jnp.float32)
    w2 = jax.random.normal(k2[1], (F, H2), dtype=jnp.float32) * 0.05
    b2 = jax.random.normal(k2[2], (H2,), dtype=jnp.float32) * 0.01
    cls2 = jax.random.normal(k2[3], (H2,), dtype=jnp.float32)
    pe2 = jax.random.normal(k2[4], (S2 + 1, H2), dtype=jnp.float32) * 0.02
    ref2 = _reference(x2, w2, b2, cls2, pe2)
    out2 = jax.block_until_ready(
        position_encoding_forward(x2, w2, b2, cls2, pe2,
                                  compute_dtype=jnp.float32, tile_s=16))
    assert out2.shape == (B, S2 + 1, H2)
    assert jnp.allclose(out2, ref2, atol=1e-4, rtol=1e-4), "tiled mismatch"

    print("KERNEL_OK")
</pallas_src>

<mosaic_0001>
module attributes {stable_mosaic.version = 11 : i64} {
  func.func @_proj_pos_kernel(%arg0: i32, %arg1: i32, %arg2: memref<1x16x16xf32, #tpu.memory_space<vmem>>, %arg3: memref<16x128xf32, #tpu.memory_space<vmem>>, %arg4: memref<16x128xf32, #tpu.memory_space<vmem>>, %arg5: memref<1x16x128xf32, #tpu.memory_space<vmem>>) attributes {dimension_semantics = [#tpu.dimension_semantics<parallel>, #tpu.dimension_semantics<parallel>], iteration_bounds = array<i64: 1, 2>, scalar_prefetch = 0 : i64, scratch_operands = 0 : i64, tpu.core_type = #tpu.core_type<tc>, window_params = [{transform_indices = @transform_0, window_bounds = array<i64: 1, 16, 16>}, {pipeline_mode = #tpu.pipeline_mode<synchronous>, transform_indices = @transform_1, window_bounds = array<i64: 16, 128>}, {transform_indices = @transform_2, window_bounds = array<i64: 16, 128>}, {transform_indices = @transform_3, window_bounds = array<i64: 1, 16, 128>}]} {
    %c0 = arith.constant 0 : index
    %c0_0 = arith.constant 0 : index
    %c0_1 = arith.constant 0 : index
    %0 = vector.load %arg2[%c0, %c0_0, %c0_1] : memref<1x16x16xf32, #tpu.memory_space<vmem>>, vector<1x16x16xf32>
    %1 = vector.shape_cast %0 : vector<1x16x16xf32> to vector<16x16xf32>
    %c0_2 = arith.constant 0 : index
    %c0_3 = arith.constant 0 : index
    %2 = vector.load %arg3[%c0_2, %c0_3] : memref<16x128xf32, #tpu.memory_space<vmem>>, vector<16x128xf32>
    %cst = arith.constant dense<0.000000e+00> : vector<16x128xf32>
    %3 = tpu.matmul %1, %2, %cst {dimension_numbers = #tpu.dot_dimension_numbers<[1], [0], [0], [1], [0, 0, 1, 1], [], []>} : vector<16x16xf32>, vector<16x128xf32>, vector<16x128xf32> -> vector<16x128xf32>
    %c0_4 = arith.constant 0 : index
    %c0_5 = arith.constant 0 : index
    %4 = vector.load %arg4[%c0_4, %c0_5] : memref<16x128xf32, #tpu.memory_space<vmem>>, vector<16x128xf32>
    %5 = arith.addf %3, %4 : vector<16x128xf32>
    %c0_6 = arith.constant 0 : index
    %c0_7 = arith.constant 0 : index
    %c0_8 = arith.constant 0 : index
    %6 = vector.load %arg5[%c0_6, %c0_7, %c0_8] : memref<1x16x128xf32, #tpu.memory_space<vmem>>, vector<1x16x128xf32>
    %7 = vector.shape_cast %6 : vector<1x16x128xf32> to vector<16x128xf32>
    %8 = vector.shape_cast %5 : vector<16x128xf32> to vector<1x16x128xf32>
    tpu.vector_store %arg5[%c0_6, %c0_7, %c0_8], %8 {strides = array<i32>} : memref<1x16x128xf32, #tpu.memory_space<vmem>>, vector<1x16x128xf32>,
    return
  }
  func.func @transform_0(%arg0: i32, %arg1: i32) -> (i32, i32, i32) {
    %c0_i32 = arith.constant 0 : i32
    %c0_i32_0 = arith.constant 0 : i32
    return %arg1, %arg0, %c0_i32 : i32, i32, i32
  }
  func.func @transform_1(%arg0: i32, %arg1: i32) -> (i32, i32) {
    %c0_i32 = arith.constant 0 : i32
    %c0_i32_0 = arith.constant 0 : i32
    %c0_i32_1 = arith.constant 0 : i32
    return %c0_i32, %c0_i32_0 : i32, i32
  }
  func.func @transform_2(%arg0: i32, %arg1: i32) -> (i32, i32) {
    %c0_i32 = arith.constant 0 : i32
    %c0_i32_0 = arith.constant 0 : i32
    return %arg0, %c0_i32 : i32, i32
  }
  func.func @transform_3(%arg0: i32, %arg1: i32) -> (i32, i32, i32) {
    %c0_i32 = arith.constant 0 : i32
    %c0_i32_0 = arith.constant 0 : i32
    return %arg1, %arg0, %c0_i32 : i32, i32, i32
  }
}

</mosaic_0001>

<llo_original>
// kernel: tpu_custom_call.1
$region0: #{tpu_custom_call.1}
  #allocation0 [shape = 'u32[]', space=smem, size = 0x4, offset = 0x4, fixed_abs, tag = 'smem constant byte address 0x4 - core index']
  #allocation1 [shape = 'u32[144,128]{1,0:T(1,128)}', space=vmem, size = 0x12000, scoped, tag = 'internal scratch']
  %s0 = inlined_call_operand.hbm [shape: f32[2,16,16], index: 0, kind: input, shape index: {}]
  %s1 = inlined_call_operand.hbm [shape: f32[16,128], index: 1, kind: input, shape index: {}]
  %s2 = inlined_call_operand.hbm [shape: f32[16,128], index: 2, kind: input, shape index: {}]
  %s3 = inlined_call_operand.hbm [shape: f32[2,16,128], index: 3, kind: output, shape index: {}]
  %s4 = sld [smem:[#allocation0]]
  $region57: #{tpu_custom_call.1} parent=0
    _
  %s6 = ssub.s32 1, %s4
  %s7 = scalar_select 0, %s6, %s4
  $region1: #{tpu_custom_call.1} parent=0
    #allocation2 [shape = 'u8[16384]{0}', space=vmem, size = 0x4000, scoped, tag = 'input window, operand 0']
    #allocation3 [shape = 's32[2]{0}', space=sflag, size = 0x8, scoped, tag = 'scoped memory for tpu_custom_call.1']
    #allocation4 [shape = 's32[2]{0}', space=sflag, size = 0x8, scoped, tag = 'scoped memory for tpu_custom_call.1']
    #allocation5 [shape = 'u8[8192]{0}', space=vmem, size = 0x2000, scoped, tag = 'input window, operand 1, single buffered']
    #allocation6 [shape = 's32[1]{0}', space=sflag, size = 0x4, scoped, tag = 'scoped memory for tpu_custom_call.1']
    #allocation7 [shape = 'u8[8192]{0}', space=vmem, size = 0x2000, scoped, tag = 'input window, operand 2, single buffered']
    #allocation8 [shape = 'u8[16384]{0}', space=vmem, size = 0x4000, scoped, tag = 'output window, operand 0']
    %8 = vsyncpa [#allocation3], 0
    %s9 = scalar_lea.sflag [#allocation3], 1
    %10 = vsyncpa %s9, 0
    %11 = vsyncpa [#allocation6], 0
    %12 = vsyncpa [#allocation4], 0
    %s13 = scalar_lea.sflag [#allocation4], 1
    %14 = vsyncpa %s13, 0
    loop: start=0, step=1, limit=4
    $region2: #{tpu_custom_call.1} parent=1 // loop_pre_header
      _
    $region3: #{tpu_custom_call.1} parent=1 // loop_header
      %s16 = sphi 0, %s20
      %p17 = scmp.ge.s32.totalorder %s16, 4
      %s23 = sphi 0, %s35
      %s24 = sphi 0, %s31
      %s25 = sphi 0, %s23
      %s26 = sphi 0, %s24
      %s27 = sphi 0, %s25
      %s28 = sphi 0, %s26
      %s40 = sphi 0, %s42
      %s43 = sphi 0, %s40
      %s44 = sphi 0, %s43
      %s60 = sphi 0, %s44
      %s64 = sphi 0, %s64
      %s66 = sphi 0, %s64
      %s67 = sphi 0, %s66
      %s81 = sphi 0, %s67
      %s87 = sphi 0, %s89
      %s90 = sphi 0, %s87
      %s91 = sphi 0, %s90
      %s107 = sphi 0, %s91
      %s115 = sphi 0, %s117
      %s118 = sphi 0, %s115
      %s119 = sphi 0, %s118
      %s135 = sphi 0, %s119
    $region4: #{tpu_custom_call.1} parent=1 // loop_header_branch
      %19 = sbr.rel (%p17) target = $region8
    $region5: #{tpu_custom_call.1} parent=1 // loop_body
      %s21 = ssub.s32 %s16, 1
      %s22 = ssub.s32 %s16, 2
      %s29 = sadd.s32 1, %s24
      %p30 = scmp.ge.s32.totalorder %s29, 2
      %s31 = scalar_select %p30, 0, %s29
      %s32 = sadd.s32 1, %s23
      %s33 = scalar_select %p30, %s32, %s23
      %p34 = scmp.ge.s32.totalorder %s33, 1
      %s35 = scalar_select %p34, 0, %s33
      %s36 = ssub.s32 %s24, %s31
      %s37 = ssub.s32 %s23, %s35
      %s38 = sor.u32 %s36, %s37
      %p39 = scmp.eq.s32.totalorder %s38, 0
      %s41 = sadd.s32 %s40, 1
      %s42 = scalar_select %p39, %s40, %s41
      %p45 = pneg %p39
      %p46 = scmp.eq.s32.totalorder %s16, 1
      %p47 = por %p45, %p46
      %p48 = scmp.ne.s32.totalorder %s40, %s43
      %p49 = scmp.eq.s32.totalorder %s16, 0
      %p50 = por %p48, %p49
      %p51 = scmp.ne.s32.totalorder %s40, %s43
      %p52 = scmp.eq.s32.totalorder %s21, 1
      %p53 = por %p51, %p52
      %p54 = scmp.ne.s32.totalorder %s43, %s44
      %p55 = scmp.eq.s32.totalorder %s21, 0
      %p56 = por %p54, %p55
      %p57 = scmp.ne.s32.totalorder %s43, %s44
      %p58 = scmp.eq.s32.totalorder %s22, 1
      %p59 = por %p57, %p58
      %p61 = scmp.ne.s32.totalorder %s44, %s60
      %p62 = scmp.eq.s32.totalorder %s22, 0
      %p63 = por %p61, %p62
      %s65 = sadd.s32 %s64, 1
      %p68 = scmp.eq.s32.totalorder %s16, 1
      %p69 = scmp.ne.s32.totalorder %s64, %s66
      %p70 = scmp.eq.s32.totalorder %s16, 0
      %p71 = por %p69, %p70
      %p72 = scmp.ne.s32.totalorder %s64, %s66
      %p73 = scmp.eq.s32.totalorder %s21, 1
      %p74 = por %p72, %p73
      %p75 = scmp.ne.s32.totalorder %s66, %s67
      %p76 = scmp.eq.s32.totalorder %s21, 0
      %p77 = por %p75, %p76
      %p78 = scmp.ne.s32.totalorder %s66, %s67
      %p79 = scmp.eq.s32.totalorder %s22, 1
      %p80 = por %p78, %p79
      %p82 = scmp.ne.s32.totalorder %s67, %s81
      %p83 = scmp.eq.s32.totalorder %s22, 0
      %p84 = por %p82, %p83
      %s85 = ssub.s32 %s23, %s35
      %p86 = scmp.eq.s32.totalorder %s85, 0
      %s88 = sadd.s32 %s87, 1
      %s89 = scalar_select %p86, %s87, %s88
      %p92 = pneg %p86
      %p93 = scmp.eq.s32.totalorder %s16, 1
      %p94 = por %p92, %p93
      %p95 = scmp.ne.s32.totalorder %s87, %s90
      %p96 = scmp.eq.s32.totalorder %s16, 0
      %p97 = por %p95, %p96
      %p98 = scmp.ne.s32.totalorder %s87, %s90
      %p99 = scmp.eq.s32.totalorder %s21, 1
      %p100 = por %p98, %p99
      %p101 = scmp.ne.s32.totalorder %s90, %s91
      %p102 = scmp.eq.s32.totalorder %s21, 0
      %p103 = por %p101, %p102
      %p104 = scmp.ne.s32.totalorder %s90, %s91
      %p105 = scmp.eq.s32.totalorder %s22, 1
      %p106 = por %p104, %p105
      %p108 = scmp.ne.s32.totalorder %s91, %s107
      %p109 = scmp.eq.s32.totalorder %s22, 0
      %p110 = por %p108, %p109
      %s111 = ssub.s32 %s24, %s31
      %s112 = ssub.s32 %s23, %s35
      %s113 = sor.u32 %s111, %s112
      %p114 = scmp.eq.s32.totalorder %s113, 0
      %s116 = sadd.s32 %s115, 1
      %s117 = scalar_select %p114, %s115, %s116
      %p120 = pneg %p114
      %p121 = scmp.eq.s32.totalorder %s16, 1
      %p122 = por %p120, %p121
      %p123 = scmp.ne.s32.totalorder %s115, %s118
      %p124 = scmp.eq.s32.totalorder %s16, 0
      %p125 = por %p123, %p124
      %p126 = scmp.ne.s32.totalorder %s115, %s118
      %p127 = scmp.eq.s32.totalorder %s21, 1
      %p128 = por %p126, %p127
      %p129 = scmp.ne.s32.totalorder %s118, %s119
      %p130 = scmp.eq.s32.totalorder %s21, 0
      %p131 = por %p129, %p130
      %p132 = scmp.ne.s32.totalorder %s118, %s119
      %p133 = scmp.eq.s32.totalorder %s22, 1
      %p134 = por %p132, %p133
      %p136 = scmp.ne.s32.totalorder %s119, %s135
      %p137 = scmp.eq.s32.totalorder %s22, 0
      %p138 = por %p136, %p137
      %p139 = scmp.le.s32.totalorder 1, %s16
      %p140 = scmp.lt.s32.totalorder %s16, 3
      %p141 = pnand %p139, %p140
      %p142 = pneg %p141
      // Predicated region
      $region9: #{tpu_custom_call.1} parent=5 // pred_check
        _
      $region10: #{tpu_custom_call.1} parent=5 // pred_check_branch
        %144 = sbr.rel (%p141) target = $region12
      $region11: #{tpu_custom_call.1} parent=5 // pred_region
        %s145 = ssub.s32 %s16, 1
        // Predicated region
        $region13: #{tpu_custom_call.1} parent=11 // pred_check
          %p146 = pneg %p77
        $region14: #{tpu_custom_call.1} parent=11 // pred_check_branch
          %148 = sbr.rel (%p146) target = $region16
        $region15: #{tpu_custom_call.1} parent=11 // pred_region
          %s150 = ssub.s32 256, 256
          %151 = vsyncadd [#allocation6], %s150
          %s152 = sshll.u32 [#allocation5], 4
          %s153 = int_to_ptr.vmem [resolvable:$true] %s152
          %158 = dma.hbm_to_vmem [thread:$0]  %s1, 256, %s153, [#allocation6], 128, 128, 8
        $region16: #{tpu_custom_call.1} parent=11 // pred_fallthru
          _
        // Predicated region
        $region17: #{tpu_custom_call.1} parent=11 // pred_check
          %p159 = pneg %p103
        $region18: #{tpu_custom_call.1} parent=11 // pred_check_branch
          %161 = sbr.rel (%p159) target = $region20
        $region19: #{tpu_custom_call.1} parent=11 // pred_region
          %s162 = smul.u32 2, %s25
          %s164 = ssub.s32 256, 256
          %165 = vsyncadd [#allocation6], %s164
          %s166 = smul.addr %s162, 128
          %s167 = scalar_lea.hbm %s2, %s166
          %s168 = sshll.u32 [#allocation7], 4
          %s169 = int_to_ptr.vmem [resolvable:$true] %s168
          %174 = dma.hbm_to_vmem [thread:$0]  %s167, 256, %s169, [#allocation6], 128, 128, 8
        $region20: #{tpu_custom_call.1} parent=11 // pred_fallthru
          _
      $region12: #{tpu_custom_call.1} parent=5 // pred_fallthru
        _
      %p175 = scmp.lt.s32.totalorder %s16, 2
      // Predicated region
      $region21: #{tpu_custom_call.1} parent=5 // pred_check
        %p176 = pneg %p175
      $region22: #{tpu_custom_call.1} parent=5 // pred_check_branch
        %178 = sbr.rel (%p176) target = $region24
      $region23: #{tpu_custom_call.1} parent=5 // pred_region
        // Predicated region
        $region25: #{tpu_custom_call.1} parent=23 // pred_check
          %p179 = pneg %p50
        $region26: #{tpu_custom_call.1} parent=23 // pred_check_branch
          %181 = sbr.rel (%p179) target = $region28
        $region27: #{tpu_custom_call.1} parent=23 // pred_region
          %s182 = sand.u32 %s40, 1
          %s183 = scalar_lea.sflag [#allocation3], %s182
          %s184 = sand.u32 %s40, 1
          %s185 = smul.addr %s184, 16
          %s186 = scalar_lea.vmem [#allocation2], %s185
          %s187 = smul.u32 2, %s23
          %s189 = ssub.s32 256, 256
          %190 = vsyncadd %s183, %s189
          %s191 = smul.addr %s24, 2
          %s192 = sadd.s32 %s187, %s191
          %s193 = smul.addr %s192, 128
          %s194 = scalar_lea.hbm %s0, %s193
          %s195 = sshll.u32 %s186, 4
          %s196 = int_to_ptr.vmem [resolvable:$true] %s195
          %201 = dma.hbm_to_vmem [thread:$0]  %s194, 256, %s196, %s183, 128, 128, 8
        $region28: #{tpu_custom_call.1} parent=23 // pred_fallthru
          _
      $region24: #{tpu_custom_call.1} parent=5 // pred_fallthru
        _
      %p202 = scmp.le.s32.totalorder 1, %s16
      %p203 = scmp.lt.s32.totalorder %s16, 3
      %p204 = pnand %p202, %p203
      %p205 = pneg %p204
      // Predicated region
      $region29: #{tpu_custom_call.1} parent=5 // pred_check
        _
      $region30: #{tpu_custom_call.1} parent=5 // pred_check_branch
        %207 = sbr.rel (%p204) target = $region32
      $region31: #{tpu_custom_call.1} parent=5 // pred_region
        %s208 = ssub.s32 %s16, 1
        %s209 = sand.u32 %s43, 1
        %s210 = scalar_lea.sflag [#allocation3], %s209
        %s211 = sand.u32 %s43, 1
        %s212 = smul.addr %s211, 16
        %s213 = scalar_lea.vmem [#allocation2], %s212
        // Predicated region
        $region33: #{tpu_custom_call.1} parent=31 // pred_check
          %p214 = pneg %p56
        $region34: #{tpu_custom_call.1} parent=31 // pred_check_branch
          %216 = sbr.rel (%p214) target = $region36
        $region35: #{tpu_custom_call.1} parent=31 // pred_region
          %217 = dma.done %s210, 256
        $region36: #{tpu_custom_call.1} parent=31 // pred_fallthru
          _
        // Predicated region
        $region37: #{tpu_custom_call.1} parent=31 // pred_check
          %p218 = pneg %p77
        $region38: #{tpu_custom_call.1} parent=31 // pred_check_branch
          %220 = sbr.rel (%p218) target = $region40
        $region39: #{tpu_custom_call.1} parent=31 // pred_region
          %221 = dma.done [#allocation6], 256
        $region40: #{tpu_custom_call.1} parent=31 // pred_fallthru
          _
        // Predicated region
        $region41: #{tpu_custom_call.1} parent=31 // pred_check
          %p222 = pneg %p103
        $region42: #{tpu_custom_call.1} parent=31 // pred_check_branch
          %224 = sbr.rel (%p222) target = $region44
        $region43: #{tpu_custom_call.1} parent=31 // pred_region
          %225 = dma.done [#allocation6], 256
        $region44: #{tpu_custom_call.1} parent=31 // pred_fallthru
          _
        %s226 = sand.u32 %s43, 1
        %s227 = scalar_lea.sflag [#allocation3], %s226
        %s228 = sand.u32 %s43, 1
        %s229 = smul.addr %s228, 16
        %s230 = scalar_lea.vmem [#allocation2], %s229
        %p231 = pneg %p56
        %p232 = pneg %p53
        %p233 = pneg %p77
        %p234 = pneg %p74
        %p235 = pneg %p103
        %p236 = pneg %p100
        %p237 = pneg %p131
        %p238 = pneg %p128
        %s239 = sand.u32 %s118, 1
        %s240 = scalar_lea.sflag [#allocation4], %s239
        %s241 = sand.u32 %s118, 1
        %s242 = smul.addr %s241, 16
        %s243 = scalar_lea.vmem [#allocation8], %s242
        %s244 = smul.u32 2, %s25
        %s245 = smul.u32 2, %s25
        %s246 = smul.u32 2, %s25
        %v247 = vld [vmem:[%s213] sm:$0xff]
        %v248 = vld [vmem:[%s213 + $0x8] sm:$0xff]
        %v249 = vld [vmem:[#allocation5] sm:$0xff]
        %v250 = vld [vmem:[#allocation5 + $0x8] sm:$0xff]
        %v251 = vld [vmem:[#allocation7] sm:$0xff]
        %v252 = vld [vmem:[#allocation7 + $0x8] sm:$0xff]
        %vm253 = vcmask 130048
        %v255 = vsel %vm253, %v247, 0
        %v258 = vsel %vm253, %v248, 0
        %260 = vmatprep.subr.mxu0 0.0
        %261 = vmatpush1.msra.mxu0 %v249
        %262 = vmatprep.subr.mxu0 0.0
        %263 = vmatpush1.msra.mxu0 %v250
        %264 = vmatprep.subr.mxu0 0.0
        %265 = vmatpush1.msra.mxu0 0.0
        %266 = vmatprep.subr.mxu0 0.0
        %267 = vmatpush1.msra.mxu0 0.0
        %268 = vmatprep.subr.mxu0 0.0
        %269 = vmatpush1.msra.mxu0 0.0
        %270 = vmatprep.subr.mxu0 0.0
        %271 = vmatpush1.msra.mxu0 0.0
        %272 = vmatprep.subr.mxu0 0.0
        %273 = vmatpush1.msra.mxu0 0.0
        %274 = vmatprep.subr.mxu0 0.0
        %275 = vmatpush1.msra.mxu0 0.0
        %276 = vmatprep.subr.mxu0 0.0
        %277 = vmatpush1.msra.mxu0 0.0
        %278 = vmatprep.subr.mxu0 0.0
        %279 = vmatpush1.msra.mxu0 0.0
        %280 = vmatprep.subr.mxu0 0.0
        %281 = vmatpush1.msra.mxu0 0.0
        %282 = vmatprep.subr.mxu0 0.0
        %283 = vmatpush1.msra.mxu0 0.0
        %284 = vmatprep.subr.mxu0 0.0
        %285 = vmatpush1.msra.mxu0 0.0
        %286 = vmatprep.subr.mxu0 0.0
        %287 = vmatpush1.msra.mxu0 0.0
        %288 = vmatprep.subr.mxu0 0.0
        %289 = vmatpush1.msra.mxu0 0.0
        %290 = vmatprep.subr.mxu0 0.0
        %291 = vmatpush1.msra.mxu0 0.0
        %292 = vmatprep.subr.mxu0 0.0
        %293 = vmatpush1.msra.mxu0 0.0
        %294 = vmatprep.subr.mxu0 0.0
        %295 = vmatpush1.msra.mxu0 0.0
        %296 = vmatprep.subr.mxu0 0.0
        %297 = vmatpush1.msra.mxu0 0.0
        %298 = vmatprep.subr.mxu0 0.0
        %299 = vmatpush1.msra.mxu0 0.0
        %300 = vmatprep.subr.mxu0 0.0
        %301 = vmatpush1.msra.mxu0 0.0
        %302 = vmatprep.subr.mxu0 0.0
        %303 = vmatpush1.msra.mxu0 0.0
        %304 = vmatprep.subr.mxu0 0.0
        %305 = vmatpush1.msra.mxu0 0.0
        %306 = vmatprep.subr.mxu0 0.0
        %307 = vmatpush1.msra.mxu0 0.0
        %308 = vmatprep.subr.mxu0 0.0
        %309 = vmatpush1.msra.mxu0 0.0
        %310 = vmatprep.subr.mxu0 0.0
        %311 = vmatpush1.msra.mxu0 0.0
        %312 = vmatprep.subr.mxu0 0.0
        %313 = vmatpush1.msra.mxu0 0.0
        %314 = vmatprep.subr.mxu0 0.0
        %315 = vmatpush1.msra.mxu0 0.0
        %316 = vmatprep.subr.mxu0 0.0
        %317 = vmatpush1.msra.mxu0 0.0
        %318 = vmatprep.subr.mxu0 0.0
        %319 = vmatpush1.msra.mxu0 0.0
        %320 = vmatprep.subr.mxu0 0.0
        %321 = vmatpush1.msra.mxu0 0.0
        %322 = vmatprep.subr.mxu0 0.0
        %323 = vmatpush1.msra.mxu0 0.0
        %324 = vmatprep.mubr.f32.mxu0 0.0
        %325 = vmatmul.mubr.f32.gmra.mrb[0].mxu0 %v255
        %v326 = vpop.f32.mrb[0].mxu0
        %v327 = vadd.f32 %v251, %v326
        %v328 = vpop.f32.mrb[0].mxu0
        %329 = vmatprep.mubr.f32.mxu0 0.0
        %330 = vmatmul.mubr.f32.gmra.mrb[0].mxu0 %v258
        %v331 = vpop.f32.mrb[0].mxu0
        %v332 = vadd.f32 %v252, %v331
        %v333 = vpop.f32.mrb[0].mxu0
        %334 = vdwg.mxu0
        %335 = vst [vmem:[%s243] sm:$0xff] %v327
        %336 = vst [vmem:[%s243 + $0x8] sm:$0xff] %v332
        %s337 = sand.u32 %s118, 1
        %s338 = scalar_lea.sflag [#allocation4], %s337
        %s339 = sand.u32 %s118, 1
        %s340 = smul.addr %s339, 16
        %s341 = scalar_lea.vmem [#allocation8], %s340
        // Predicated region
        $region45: #{tpu_custom_call.1} parent=31 // pred_check
          %p342 = pneg %p128
        $region46: #{tpu_custom_call.1} parent=31 // pred_check_branch
          %344 = sbr.rel (%p342) target = $region48
        $region47: #{tpu_custom_call.1} parent=31 // pred_region
          %s345 = smul.u32 2, %s25
          %s347 = ssub.s32 256, 256
          %348 = vsyncadd %s338, %s347
          %s349 = smul.addr %s26, 2
          %s350 = sadd.s32 %s345, %s349
          %s351 = smul.addr %s350, 128
          %s352 = scalar_lea.hbm %s3, %s351
          %s353 = sshll.u32 %s341, 4
          %s354 = int_to_ptr.vmem [resolvable:$true] %s353
          %359 = dma.vmem_to_hbm [thread:$0]  %s354, 256, %s352, %s338, 128, 128, 8
        $region48: #{tpu_custom_call.1} parent=31 // pred_fallthru
          _
      $region32: #{tpu_custom_call.1} parent=5 // pred_fallthru
        _
      %p360 = scmp.le.s32.totalorder 2, %s16
      // Predicated region
      $region49: #{tpu_custom_call.1} parent=5 // pred_check
        %p361 = pneg %p360
      $region50: #{tpu_custom_call.1} parent=5 // pred_check_branch
        %363 = sbr.rel (%p361) target = $region52
      $region51: #{tpu_custom_call.1} parent=5 // pred_region
        %s364 = ssub.s32 %s16, 2
        // Predicated region
        $region53: #{tpu_custom_call.1} parent=51 // pred_check
          %p365 = pneg %p134
        $region54: #{tpu_custom_call.1} parent=51 // pred_check_branch
          %367 = sbr.rel (%p365) target = $region56
        $region55: #{tpu_custom_call.1} parent=51 // pred_region
          %s368 = sand.u32 %s119, 1
          %s369 = scalar_lea.sflag [#allocation4], %s368
          %s370 = sand.u32 %s119, 1
          %s371 = smul.addr %s370, 16
          %s372 = scalar_lea.vmem [#allocation8], %s371
          %373 = dma.done %s369, 256
        $region56: #{tpu_custom_call.1} parent=51 // pred_fallthru
          _
      $region52: #{tpu_custom_call.1} parent=5 // pred_fallthru
        _
    $region6: #{tpu_custom_call.1} parent=1 // loop_footer
      %s20 = sadd.s32 1, %s16
    $region7: #{tpu_custom_call.1} parent=1 // loop_footer_branch
      %15 = sbr.rel target = $region3
    $region8: #{tpu_custom_call.1} parent=1 // loop_exit
      _
    %374 = vsyncpa [#allocation3], 1
    %s375 = scalar_lea.sflag [#allocation3], 1
    %376 = vsyncpa %s375, 1
    %377 = vsyncpa [#allocation6], 1
    %378 = vsyncpa [#allocation4], 1
    %s379 = scalar_lea.sflag [#allocation4], 1
    %380 = vsyncpa %s379, 1

</llo_original>
